<compile_context>
chip_gen: v7x
topology: tpu7x:2x2x1
jax: 0.10.0
libtpu: 0.0.40
codegen_flags: <defaults>
</compile_context>

<pallas_src>
import math
from functools import partial

import jax
import jax.numpy as jnp
from jax.experimental import pallas as pl
from jax.experimental.pallas import tpu as pltpu


def _round_up(x, m):
    return ((x + m - 1) // m) * m


def _pad_axis(x, axis, target):
    pad = target - x.shape[axis]
    if pad == 0:
        return x
    widths = [(0, 0)] * x.ndim
    widths[axis] = (0, pad)
    return jnp.pad(x, widths)


def _vmem_capacity_bytes():
    """Physical VMEM per core; conservative (v7x) fallback if query fails."""
    try:
        cap = int(pltpu.get_tpu_info().vmem_capacity_bytes)
        return max(min(cap, 128 * 1024 * 1024), 16 * 1024 * 1024)
    except Exception:
        return 64 * 1024 * 1024


def _choose_tile_n(H_pad, max_tile_elems):
    """Largest multiple-of-128 divisor of H_pad with H_pad*tn <= max_tile_elems,
    preferring an even number of tiles (v7x: 2 TensorCores)."""
    n128 = H_pad // 128
    cands = [d * 128 for d in range(1, n128 + 1) if n128 % d == 0]
    ok = [c for c in cands if H_pad * c <= max_tile_elems]
    multi = [c for c in ok if H_pad // c >= 2]
    pool = multi if multi else (ok if ok else [128])
    return max(pool, key=lambda c: ((H_pad // c) % 2 == 0, c))


# ---------------------------------------------------------------------------
# Kernels
# ---------------------------------------------------------------------------
def _stage1_kernel(t_ref, freqs_ref, w1_ref, b1_ref, h_ref):
    # t_ref: (B_pad, 1) f32, freqs_ref: (1, half) f32,
    # w1_ref: (F, H_pad) f32, b1_ref: (1, H_pad) f32 -> h_ref: (B_pad, H_pad) bf16
    args = t_ref[...] * freqs_ref[...]                               # (B_pad, half)
    emb = jnp.concatenate([jnp.cos(args), jnp.sin(args)], axis=-1)   # (B_pad, F)
    h = jnp.dot(emb, w1_ref[...], preferred_element_type=jnp.float32) + b1_ref[...]
    h = h * jax.nn.sigmoid(h)                                        # SiLU
    h_ref[...] = h.astype(h_ref.dtype)


def _stage2_kernel(h_ref, w2_ref, b2_ref, o_ref):
    # h_ref:  (B_pad, H_pad) bf16, resident (constant index map)
    # w2_ref: (1, H_pad, tn) bf16, streamed contiguous tile
    # b2_ref: (1, tn) f32, streamed
    # o_ref:  (B_pad, tn) f32
    o_ref[...] = (jnp.dot(h_ref[...], w2_ref[0],
                          preferred_element_type=jnp.float32)
                  + b2_ref[...])


# ---------------------------------------------------------------------------
# Parameter preparation (call ONCE, not per forward pass)
# ---------------------------------------------------------------------------
def prepare_timestep_embedder_params(w1, b1, w2, b2,
                                     frequency_embedding_size=256,
                                     max_period=10000.0):
    """w1: (F, H), b1: (H,), w2: (H, H), b2: (H,)  (Linear weights as (in, out)).
    Returns a dict of padded / bf16 / pre-tiled arrays ready for the kernels."""
    F = frequency_embedding_size
    H = w2.shape[1]
    assert w1.shape == (F, H) and w2.shape == (H, H)
    half = F // 2
    # TODO(synk): odd frequency_embedding_size zero-pad branch of the torch code
    # is not implemented (F assumed even, as in the DiT defaults).

    H_pad = _round_up(H, 128)

    freqs = jnp.exp(
        -math.log(max_period) * jnp.arange(half, dtype=jnp.float32) / half
    ).reshape(1, half)

    w1p = _pad_axis(w1.astype(jnp.float32), 1, H_pad)                        # (F, H_pad)
    b1p = _pad_axis(b1.astype(jnp.float32).reshape(1, H), 1, H_pad)          # (1, H_pad)
    w2p = _pad_axis(_pad_axis(w2.astype(jnp.float32), 0, H_pad), 1, H_pad
                    ).astype(jnp.bfloat16)                                   # (H_pad, H_pad)
    b2p = _pad_axis(b2.astype(jnp.float32).reshape(1, H), 1, H_pad)          # (1, H_pad)

    # Double-buffered bf16 W2 tile gets <= 1/4 of physical VMEM:
    #   2 * H_pad * tn * 2 bytes <= cap/4  =>  H_pad * tn <= cap/16 elements.
    max_tile_elems = _vmem_capacity_bytes() // 16
    tn = _choose_tile_n(H_pad, max_tile_elems)
    n_tiles = H_pad // tn

    # Pre-tile W2 into an HBM-contiguous (n_tiles, H_pad, tn) layout so each
    # streamed column tile is a single contiguous DMA burst.
    w2_tiled = w2p.reshape(H_pad, n_tiles, tn).transpose(1, 0, 2)

    return {"freqs": freqs, "w1": w1p, "b1": b1p,
            "w2_tiled": w2_tiled, "b2": b2p}


# ---------------------------------------------------------------------------
# Forward pass
# ---------------------------------------------------------------------------
@partial(jax.jit, static_argnames=("hidden_size",))
def timestep_embedder_apply(t, freqs, w1, b1, w2_tiled, b2, hidden_size):
    B = t.shape[0]
    n_tiles, H_pad, tn = w2_tiled.shape
    half = freqs.shape[1]
    F = w1.shape[0]
    B_pad = _round_up(max(B, 8), 8)

    t2d = _pad_axis(t.astype(jnp.float32).reshape(B, 1), 0, B_pad)   # (B_pad, 1)

    # Stage 1: sinusoidal embedding -> Linear -> SiLU (single tiny grid step).
    h = pl.pallas_call(
        _stage1_kernel,
        out_shape=jax.ShapeDtypeStruct((B_pad, H_pad), jnp.bfloat16),
        grid_spec=pltpu.PrefetchScalarGridSpec(
            num_scalar_prefetch=0,
            grid=(1,),
            in_specs=[
                pl.BlockSpec((B_pad, 1), lambda i: (0, 0)),
                pl.BlockSpec((1, half), lambda i: (0, 0)),
                pl.BlockSpec((F, H_pad), lambda i: (0, 0)),
                pl.BlockSpec((1, H_pad), lambda i: (0, 0)),
            ],
            out_specs=pl.BlockSpec((B_pad, H_pad), lambda i: (0, 0)),
        ),
        compiler_params=pltpu.CompilerParams(
            dimension_semantics=("arbitrary",)),
    )(t2d, freqs, w1, b1)

    # Stage 2: stream HBM-contiguous W2 column tiles; h stays VMEM-resident.
    vmem_need = (2 * H_pad * tn * 2        # double-buffered bf16 W2 tiles
                 + 2 * B_pad * H_pad * 2   # resident h (conservatively x2)
                 + 2 * B_pad * tn * 4      # output tiles
                 + 2 * tn * 4              # b2 tiles
                 + (4 << 20))              # headroom for compiler scratch
    vmem_limit = int(max(32 << 20, vmem_need))

    out_padded = pl.pallas_call(
        _stage2_kernel,
        out_shape=jax.ShapeDtypeStruct((B_pad, H_pad), jnp.float32),
        grid_spec=pltpu.PrefetchScalarGridSpec(
            num_scalar_prefetch=0,
            grid=(n_tiles,),
            in_specs=[
                pl.BlockSpec((B_pad, H_pad), lambda j: (0, 0)),      # h (resident)
                pl.BlockSpec((1, H_pad, tn), lambda j: (j, 0, 0)),   # W2 tile (contiguous)
                pl.BlockSpec((1, tn), lambda j: (0, j)),             # b2 tile
            ],
            out_specs=pl.BlockSpec((B_pad, tn), lambda j: (0, j)),
        ),
        compiler_params=pltpu.CompilerParams(
            dimension_semantics=("parallel",),
            vmem_limit_bytes=vmem_limit,
        ),
    )(h, w2_tiled, b2)

    return out_padded[:B, :hidden_size]


def timestep_embedder(t, params, hidden_size):
    return timestep_embedder_apply(t, params["freqs"], params["w1"], params["b1"],
                                   params["w2_tiled"], params["b2"],
                                   hidden_size=hidden_size)


# ---------------------------------------------------------------------------
# Pure-JAX reference (mirrors the torch module)
# ---------------------------------------------------------------------------
def reference(t, w1, b1, w2, b2, frequency_embedding_size=256, max_period=10000.0):
    half = frequency_embedding_size // 2
    freqs = jnp.exp(-math.log(max_period) * jnp.arange(half, dtype=jnp.float32) / half)
    args = t.astype(jnp.float32)[:, None] * freqs[None]
    emb = jnp.concatenate([jnp.cos(args), jnp.sin(args)], axis=-1)
    h = emb @ w1 + b1
    h = h * jax.nn.sigmoid(h)
    return h @ w2 + b2


if __name__ == "__main__":
    freq_size = 256

    def run_case(case_key, B, hidden_size):
        k_t, k_w1, k_b1, k_w2, k_b2 = jax.random.split(case_key, 5)
        t = jax.random.uniform(k_t, (B,), dtype=jnp.float32) * 1000.0
        w1 = jax.random.normal(k_w1, (freq_size, hidden_size), jnp.float32) * 0.02
        b1 = jax.random.normal(k_b1, (hidden_size,), jnp.float32) * 0.02
        w2 = jax.random.normal(k_w2, (hidden_size, hidden_size), jnp.float32) * 0.02
        b2 = jax.random.normal(k_b2, (hidden_size,), jnp.float32) * 0.02

        params = prepare_timestep_embedder_params(
            w1, b1, w2, b2, frequency_embedding_size=freq_size)
        out = timestep_embedder(t, params, hidden_size)
        out = jax.block_until_ready(out)

        ref = reference(t, w1, b1, w2, b2, frequency_embedding_size=freq_size)
        assert out.shape == (B, hidden_size)
        # bf16 weights/activations on the MXU (f32 accumulate) vs f32 reference.
        assert jnp.allclose(out, ref, atol=5e-3, rtol=5e-3), \
            f"mismatch vs reference (H={hidden_size})"

    key = jax.random.PRNGKey(0)
    k1, k2 = jax.random.split(key)
    run_case(k1, B=8, hidden_size=32)      # single-tile path (grid=(1,))
    run_case(k2, B=4, hidden_size=1152)    # multi-tile streamed path (DiT-XL width)

    print("KERNEL_OK")
</pallas_src>

<mosaic_0001>
module attributes {stable_mosaic.version = 11 : i64} {
  func.func @_stage2_kernel(%arg0: i32, %arg1: memref<8x128xbf16, #tpu.memory_space<vmem>>, %arg2: memref<1x128x128xbf16, #tpu.memory_space<vmem>>, %arg3: memref<1x128xf32, #tpu.memory_space<vmem>>, %arg4: memref<8x128xf32, #tpu.memory_space<vmem>>) attributes {dimension_semantics = [#tpu.dimension_semantics<parallel>], iteration_bounds = array<i64: 1>, scalar_prefetch = 0 : i64, scratch_operands = 0 : i64, tpu.core_type = #tpu.core_type<tc>, window_params = [{pipeline_mode = #tpu.pipeline_mode<synchronous>, transform_indices = @transform_0, window_bounds = array<i64: 8, 128>}, {transform_indices = @transform_1, window_bounds = array<i64: 1, 128, 128>}, {transform_indices = @transform_2, window_bounds = array<i64: 1, 128>}, {transform_indices = @transform_3, window_bounds = array<i64: 8, 128>}]} {
    %c0 = arith.constant 0 : index
    %c0_0 = arith.constant 0 : index
    %0 = vector.load %arg1[%c0, %c0_0] : memref<8x128xbf16, #tpu.memory_space<vmem>>, vector<8x128xbf16>
    %c0_1 = arith.constant 0 : index
    %c0_2 = arith.constant 0 : index
    %c0_3 = arith.constant 0 : index
    %1 = vector.load %arg2[%c0_1, %c0_2, %c0_3] : memref<1x128x128xbf16, #tpu.memory_space<vmem>>, vector<1x128x128xbf16>
    %2 = vector.shape_cast %1 : vector<1x128x128xbf16> to vector<128x128xbf16>
    %cst = arith.constant dense<0.000000e+00> : vector<8x128xf32>
    %3 = tpu.matmul %0, %2, %cst {dimension_numbers = #tpu.dot_dimension_numbers<[1], [0], [0], [1], [0, 0, 1, 1], [], []>} : vector<8x128xbf16>, vector<128x128xbf16>, vector<8x128xf32> -> vector<8x128xf32>
    %c0_4 = arith.constant 0 : index
    %c0_5 = arith.constant 0 : index
    %4 = vector.load %arg3[%c0_4, %c0_5] : memref<1x128xf32, #tpu.memory_space<vmem>>, vector<1x128xf32>
    %5 = vector.broadcast %4 : vector<1x128xf32> to vector<8x128xf32>
    %6 = arith.addf %3, %5 : vector<8x128xf32>
    %c0_6 = arith.constant 0 : index
    %c0_7 = arith.constant 0 : index
    %7 = vector.load %arg4[%c0_6, %c0_7] : memref<8x128xf32, #tpu.memory_space<vmem>>, vector<8x128xf32>
    tpu.vector_store %arg4[%c0_6, %c0_7], %6 {strides = array<i32>} : memref<8x128xf32, #tpu.memory_space<vmem>>, vector<8x128xf32>,
    return
  }
  func.func @transform_0(%arg0: i32) -> (i32, i32) {
    %c0_i32 = arith.constant 0 : i32
    %c0_i32_0 = arith.constant 0 : i32
    %c0_i32_1 = arith.constant 0 : i32
    return %c0_i32, %c0_i32_0 : i32, i32
  }
  func.func @transform_1(%arg0: i32) -> (i32, i32, i32) {
    %c0_i32 = arith.constant 0 : i32
    %c0_i32_0 = arith.constant 0 : i32
    %c0_i32_1 = arith.constant 0 : i32
    return %arg0, %c0_i32, %c0_i32_0 : i32, i32, i32
  }
  func.func @transform_2(%arg0: i32) -> (i32, i32) {
    %c0_i32 = arith.constant 0 : i32
    %c0_i32_0 = arith.constant 0 : i32
    return %c0_i32, %arg0 : i32, i32
  }
  func.func @transform_3(%arg0: i32) -> (i32, i32) {
    %c0_i32 = arith.constant 0 : i32
    %c0_i32_0 = arith.constant 0 : i32
    return %c0_i32, %arg0 : i32, i32
  }
}

module attributes {stable_mosaic.version = 11 : i64} {
  func.func @_stage1_kernel(%arg0: i32, %arg1: memref<8x1xf32, #tpu.memory_space<vmem>>, %arg2: memref<1x128xf32, #tpu.memory_space<vmem>>, %arg3: memref<256x128xf32, #tpu.memory_space<vmem>>, %arg4: memref<1x128xf32, #tpu.memory_space<vmem>>, %arg5: memref<8x128xbf16, #tpu.memory_space<vmem>>) attributes {dimension_semantics = [#tpu.dimension_semantics<arbitrary>], iteration_bounds = array<i64: 1>, scalar_prefetch = 0 : i64, scratch_operands = 0 : i64, tpu.core_type = #tpu.core_type<tc>, window_params = [{pipeline_mode = #tpu.pipeline_mode<synchronous>, transform_indices = @transform_0, window_bounds = array<i64: 8, 1>}, {pipeline_mode = #tpu.pipeline_mode<synchronous>, transform_indices = @transform_1, window_bounds = array<i64: 1, 128>}, {pipeline_mode = #tpu.pipeline_mode<synchronous>, transform_indices = @transform_2, window_bounds = array<i64: 256, 128>}, {pipeline_mode = #tpu.pipeline_mode<synchronous>, transform_indices = @transform_3, window_bounds = array<i64: 1, 128>}, {pipeline_mode = #tpu.pipeline_mode<synchronous>, transform_indices = @transform_4, window_bounds = array<i64: 8, 128>}]} {
    %c0 = arith.constant 0 : index
    %c0_0 = arith.constant 0 : index
    %0 = vector.load %arg1[%c0, %c0_0] : memref<8x1xf32, #tpu.memory_space<vmem>>, vector<8x1xf32>
    %c0_1 = arith.constant 0 : index
    %c0_2 = arith.constant 0 : index
    %1 = vector.load %arg2[%c0_1, %c0_2] : memref<1x128xf32, #tpu.memory_space<vmem>>, vector<1x128xf32>
    %2 = vector.broadcast %0 : vector<8x1xf32> to vector<8x128xf32>
    %3 = vector.broadcast %1 : vector<1x128xf32> to vector<8x128xf32>
    %4 = arith.mulf %2, %3 : vector<8x128xf32>
    %5 = math.cos %4 : vector<8x128xf32>
    %6 = math.sin %4 : vector<8x128xf32>
    %7 = tpu.concatenate %5, %6 in 1 : vector<8x128xf32>, vector<8x128xf32> -> vector<8x256xf32>
    %c0_3 = arith.constant 0 : index
    %c0_4 = arith.constant 0 : index
    %8 = vector.load %arg3[%c0_3, %c0_4] : memref<256x128xf32, #tpu.memory_space<vmem>>, vector<256x128xf32>
    %cst = arith.constant dense<0.000000e+00> : vector<8x128xf32>
    %9 = tpu.matmul %7, %8, %cst {dimension_numbers = #tpu.dot_dimension_numbers<[1], [0], [0], [1], [0, 0, 1, 1], [], []>} : vector<8x256xf32>, vector<256x128xf32>, vector<8x128xf32> -> vector<8x128xf32>
    %c0_5 = arith.constant 0 : index
    %c0_6 = arith.constant 0 : index
    %10 = vector.load %arg4[%c0_5, %c0_6] : memref<1x128xf32, #tpu.memory_space<vmem>>, vector<1x128xf32>
    %11 = vector.broadcast %10 : vector<1x128xf32> to vector<8x128xf32>
    %12 = arith.addf %9, %11 : vector<8x128xf32>
    %13 = arith.negf %12 : vector<8x128xf32>
    %14 = math.exp %13 : vector<8x128xf32>
    %cst_7 = arith.constant 1.000000e+00 : f32
    %15 = vector.broadcast %cst_7 : f32 to vector<8x128xf32>
    %16 = arith.addf %15, %14 : vector<8x128xf32>
    %17 = arith.divf %15, %16 : vector<8x128xf32>
    %18 = arith.mulf %12, %17 : vector<8x128xf32>
    %19 = arith.truncf %18 : vector<8x128xf32> to vector<8x128xbf16>
    %c0_8 = arith.constant 0 : index
    %c0_9 = arith.constant 0 : index
    %20 = vector.load %arg5[%c0_8, %c0_9] : memref<8x128xbf16, #tpu.memory_space<vmem>>, vector<8x128xbf16>
    tpu.vector_store %arg5[%c0_8, %c0_9], %19 {strides = array<i32>} : memref<8x128xbf16, #tpu.memory_space<vmem>>, vector<8x128xbf16>,
    return
  }
  func.func @transform_0(%arg0: i32) -> (i32, i32) {
    %c0_i32 = arith.constant 0 : i32
    %c0_i32_0 = arith.constant 0 : i32
    %c0_i32_1 = arith.constant 0 : i32
    return %c0_i32, %c0_i32_0 : i32, i32
  }
  func.func @transform_1(%arg0: i32) -> (i32, i32) {
    %c0_i32 = arith.constant 0 : i32
    %c0_i32_0 = arith.constant 0 : i32
    %c0_i32_1 = arith.constant 0 : i32
    return %c0_i32, %c0_i32_0 : i32, i32
  }
  func.func @transform_2(%arg0: i32) -> (i32, i32) {
    %c0_i32 = arith.constant 0 : i32
    %c0_i32_0 = arith.constant 0 : i32
    %c0_i32_1 = arith.constant 0 : i32
    return %c0_i32, %c0_i32_0 : i32, i32
  }
  func.func @transform_3(%arg0: i32) -> (i32, i32) {
    %c0_i32 = arith.constant 0 : i32
    %c0_i32_0 = arith.constant 0 : i32
    %c0_i32_1 = arith.constant 0 : i32
    return %c0_i32, %c0_i32_0 : i32, i32
  }
  func.func @transform_4(%arg0: i32) -> (i32, i32) {
    %c0_i32 = arith.constant 0 : i32
    %c0_i32_0 = arith.constant 0 : i32
    %c0_i32_1 = arith.constant 0 : i32
    return %c0_i32, %c0_i32_0 : i32, i32
  }
}

</mosaic_0001>

<llo_original>
// kernel: timestep_embedder_apply.3
$region0: #{timestep_embedder_apply.3}
  #allocation0 [shape = 'u32[]', space=smem, size = 0x4, offset = 0x4, fixed_abs, tag = 'smem constant byte address 0x4 - core index']
  #allocation1 [shape = 'u32[144,128]{1,0:T(1,128)}', space=vmem, size = 0x12000, scoped, tag = 'internal scratch']
  %s0 = inlined_call_operand.vmem [shape: bf16[8,128], index: 0, kind: input, shape index: {}]
  %s1 = inlined_call_operand.vmem [shape: bf16[1,128,128], index: 1, kind: input, shape index: {}]
  %s2 = inlined_call_operand.vmem [shape: f32[1,128], index: 2, kind: input, shape index: {}]
  %s3 = inlined_call_operand.hbm [shape: f32[8,128], index: 3, kind: output, shape index: {}]
  %s4 = sld [smem:[#allocation0]]
  $region22: #{timestep_embedder_apply.3} parent=0
    _
  %s6 = ssub.s32 1, %s4
  %s7 = scalar_select 0, %s6, %s4
  $region1: #{timestep_embedder_apply.3} parent=0
    #allocation2 [shape = 'u8[4096]{0}', space=vmem, size = 0x1000, scoped, tag = 'output window, operand 0, single buffered']
    #allocation3 [shape = 's32[1]{0}', space=sflag, size = 0x4, scoped, tag = 'scoped memory for timestep_embedder_apply.3']
    %8 = vsyncpa [#allocation3], 0
    // Predicated region
    $region2: #{timestep_embedder_apply.3} parent=1 // pred_check
      _
    $region3: #{timestep_embedder_apply.3} parent=1 // pred_check_branch
      %10 = sbr.rel (0) target = $region5
    $region4: #{timestep_embedder_apply.3} parent=1 // pred_region
      _
    $region5: #{timestep_embedder_apply.3} parent=1 // pred_fallthru
      _
    // Predicated region
    $region6: #{timestep_embedder_apply.3} parent=1 // pred_check
      _
    $region7: #{timestep_embedder_apply.3} parent=1 // pred_check_branch
      %12 = sbr.rel (0) target = $region9
    $region8: #{timestep_embedder_apply.3} parent=1 // pred_region
      _
    $region9: #{timestep_embedder_apply.3} parent=1 // pred_fallthru
      _
    // Predicated region
    $region10: #{timestep_embedder_apply.3} parent=1 // pred_check
      _
    $region11: #{timestep_embedder_apply.3} parent=1 // pred_check_branch
      %14 = sbr.rel (0) target = $region13
    $region12: #{timestep_embedder_apply.3} parent=1 // pred_region
      _
    $region13: #{timestep_embedder_apply.3} parent=1 // pred_fallthru
      _
    %v16 = vld [vmem:[%s0] sm:$0xf]
    %v17 = vld [vmem:[%s1] sm:$0xf]
    %v18 = vld [vmem:[%s1 + $0x4] sm:$0xf]
    %v19 = vld [vmem:[%s1 + $0x8] sm:$0xf]
    %v20 = vld [vmem:[%s1 + $0xc] sm:$0xf]
    %v21 = vld [vmem:[%s1 + $0x10] sm:$0xf]
    %v22 = vld [vmem:[%s1 + $0x14] sm:$0xf]
    %v23 = vld [vmem:[%s1 + $0x18] sm:$0xf]
    %v24 = vld [vmem:[%s1 + $0x1c] sm:$0xf]
    %v25 = vld [vmem:[%s1 + $0x20] sm:$0xf]
    %v26 = vld [vmem:[%s1 + $0x24] sm:$0xf]
    %v27 = vld [vmem:[%s1 + $0x28] sm:$0xf]
    %v28 = vld [vmem:[%s1 + $0x2c] sm:$0xf]
    %v29 = vld [vmem:[%s1 + $0x30] sm:$0xf]
    %v30 = vld [vmem:[%s1 + $0x34] sm:$0xf]
    %v31 = vld [vmem:[%s1 + $0x38] sm:$0xf]
    %v32 = vld [vmem:[%s1 + $0x3c] sm:$0xf]
    %v33 = vld [vmem:[%s2] sm:$0x1]
    %v35 = vlaneseq
    %v36 = vshrl.u32 %v35, 7
    %v37 = vsub.s32 0, %v36
    %v38 = vrot.slane %v33, %v37
    %v56 = vunpack.c.l.b16 %v17
    %v57 = vunpack.c.l.b16 %v18
    %v58 = vunpack.c.l.b16 %v19
    %v59 = vunpack.c.l.b16 %v20
    %v60 = vunpack.c.l.b16 %v21
    %v61 = vunpack.c.l.b16 %v22
    %v62 = vunpack.c.l.b16 %v23
    %v63 = vunpack.c.l.b16 %v24
    %v64 = vunpack.c.l.b16 %v25
    %v65 = vunpack.c.l.b16 %v26
    %v66 = vunpack.c.l.b16 %v27
    %v67 = vunpack.c.l.b16 %v28
    %v68 = vunpack.c.l.b16 %v29
    %v69 = vunpack.c.l.b16 %v30
    %v70 = vunpack.c.l.b16 %v31
    %v71 = vunpack.c.l.b16 %v32
    %v72 = vpack.c.b16 %v57, %v56
    %v73 = vpack.c.b16 %v59, %v58
    %v74 = vpack.c.b16 %v61, %v60
    %v75 = vpack.c.b16 %v63, %v62
    %v76 = vpack.c.b16 %v65, %v64
    %v77 = vpack.c.b16 %v67, %v66
    %v78 = vpack.c.b16 %v69, %v68
    %v79 = vpack.c.b16 %v71, %v70
    %88 = vmatprep.subr.bf16.mxu0 0
    %89 = vmatpush1.bf16.msra.mxu0 %v72
    %90 = vmatprep.subr.bf16.mxu0 0
    %91 = vmatpush1.bf16.msra.mxu0 %v73
    %92 = vmatprep.subr.bf16.mxu0 0
    %93 = vmatpush1.bf16.msra.mxu0 %v74
    %94 = vmatprep.subr.bf16.mxu0 0
    %95 = vmatpush1.bf16.msra.mxu0 %v75
    %96 = vmatprep.subr.bf16.mxu0 0
    %97 = vmatpush1.bf16.msra.mxu0 %v76
    %98 = vmatprep.subr.bf16.mxu0 0
    %99 = vmatpush1.bf16.msra.mxu0 %v77
    %100 = vmatprep.subr.bf16.mxu0 0
    %101 = vmatpush1.bf16.msra.mxu0 %v78
    %102 = vmatprep.subr.bf16.mxu0 0
    %103 = vmatpush1.bf16.msra.mxu0 %v79
    %104 = vmatprep.subr.bf16.mxu0 0
    %105 = vmatpush1.bf16.msra.mxu0 0
    %106 = vmatprep.subr.bf16.mxu0 0
    %107 = vmatpush1.bf16.msra.mxu0 0
    %108 = vmatprep.subr.bf16.mxu0 0
    %109 = vmatpush1.bf16.msra.mxu0 0
    %110 = vmatprep.subr.bf16.mxu0 0
    %111 = vmatpush1.bf16.msra.mxu0 0
    %112 = vmatprep.subr.bf16.mxu0 0
    %113 = vmatpush1.bf16.msra.mxu0 0
    %114 = vmatprep.subr.bf16.mxu0 0
    %115 = vmatpush1.bf16.msra.mxu0 0
    %116 = vmatprep.subr.bf16.mxu0 0
    %117 = vmatpush1.bf16.msra.mxu0 0
    %118 = vmatprep.subr.bf16.mxu0 0
    %119 = vmatpush1.bf16.msra.mxu0 0
    %120 = vmatprep.mubr.bf16.mxu0 0
    %121 = vmatmul.mubr.bf16.gmra.mrb[0].mxu0 %v16
    %v122 = vpop.f32.mrb[0].mxu0
    %v123 = vadd.f32 %v38, %v122
    %v124 = vpop.f32.mrb[0].mxu0
    %v125 = vpop.f32.mrb[0].mxu0
    %v126 = vpop.f32.mrb[0].mxu0
    %127 = vdwg.mxu0
    %128 = vst [vmem:[#allocation2] sm:$0xff] %v123
    // Predicated region
    $region14: #{timestep_embedder_apply.3} parent=1 // pred_check
      _
    $region15: #{timestep_embedder_apply.3} parent=1 // pred_check_branch
      %130 = sbr.rel (0) target = $region17
    $region16: #{timestep_embedder_apply.3} parent=1 // pred_region
      %s132 = ssub.s32 128, 128
      %133 = vsyncadd [#allocation3], %s132
      %s135 = sshll.u32 [#allocation2], 4
      %s136 = int_to_ptr.vmem [resolvable:$true] %s135
      %138 = dma.vmem_to_hbm [thread:$0]  %s136, 128, %s3, [#allocation3]
    $region17: #{timestep_embedder_apply.3} parent=1 // pred_fallthru
      _
    // Predicated region
    $region18: #{timestep_embedder_apply.3} parent=1 // pred_check
      _
    $region19: #{timestep_embedder_apply.3} parent=1 // pred_check_branch
      %140 = sbr.rel (0) target = $region21
    $region20: #{timestep_embedder_apply.3} parent=1 // pred_region
      %141 = dma.done [#allocation3], 128
    $region21: #{timestep_embedder_apply.3} parent=1 // pred_fallthru
      _
    %142 = vsyncpa [#allocation3], 1

// kernel: timestep_embedder_apply.2
$region0: #{timestep_embedder_apply.2}
  #allocation0 [shape = 'u32[]', space=smem, size = 0x4, offset = 0x4, fixed_abs, tag = 'smem constant byte address 0x4 - core index']
  #allocation1 [shape = 'u32[144,128]{1,0:T(1,128)}', space=vmem, size = 0x12000, scoped, tag = 'internal scratch']
  %s0 = inlined_call_operand.vmem [shape: f32[8,1], index: 0, kind: input, shape index: {}]
  %s1 = inlined_call_operand.vmem [shape: f32[1,128], index: 1, kind: input, shape index: {}]
  %s2 = inlined_call_operand.hbm [shape: f32[256,128], index: 2, kind: input, shape index: {}]
  %s3 = inlined_call_operand.vmem [shape: f32[1,128], index: 3, kind: input, shape index: {}]
  %s4 = inlined_call_operand.vmem [shape: bf16[8,128], index: 4, kind: output, shape index: {}]
  %s5 = sld [smem:[#allocation0]]
  $region30: #{timestep_embedder_apply.2} parent=0
    _
  %s7 = ssub.s32 1, %s5
  %s8 = scalar_select 0, %s7, %s5
  $region1: #{timestep_embedder_apply.2} parent=0
    #allocation2 [shape = 'u8[131072]{0}', space=vmem, size = 0x20000, scoped, tag = 'input window, operand 2, single buffered']
    #allocation3 [shape = 's32[1]{0}', space=sflag, size = 0x4, scoped, tag = 'scoped memory for timestep_embedder_apply.2']
    %9 = vsyncpa [#allocation3], 0
    // Predicated region
    $region2: #{timestep_embedder_apply.2} parent=1 // pred_check
      _
    $region3: #{timestep_embedder_apply.2} parent=1 // pred_check_branch
      %11 = sbr.rel (0) target = $region5
    $region4: #{timestep_embedder_apply.2} parent=1 // pred_region
      _
    $region5: #{timestep_embedder_apply.2} parent=1 // pred_fallthru
      _
    // Predicated region
    $region6: #{timestep_embedder_apply.2} parent=1 // pred_check
      _
    $region7: #{timestep_embedder_apply.2} parent=1 // pred_check_branch
      %13 = sbr.rel (0) target = $region9
    $region8: #{timestep_embedder_apply.2} parent=1 // pred_region
      _
    $region9: #{timestep_embedder_apply.2} parent=1 // pred_fallthru
      _
    // Predicated region
    $region10: #{timestep_embedder_apply.2} parent=1 // pred_check
      _
    $region11: #{timestep_embedder_apply.2} parent=1 // pred_check_branch
      %15 = sbr.rel (0) target = $region13
    $region12: #{timestep_embedder_apply.2} parent=1 // pred_region
      %s17 = ssub.s32 4096, 4096
      %18 = vsyncadd [#allocation3], %s17
      %s19 = sshll.u32 [#allocation2], 4
      %s20 = int_to_ptr.vmem [resolvable:$true] %s19
      %25 = dma.hbm_to_vmem [thread:$0]  %s2, 4096, %s20, [#allocation3], 128, 128, 8
    $region13: #{timestep_embedder_apply.2} parent=1 // pred_fallthru
      _
    // Predicated region
    $region14: #{timestep_embedder_apply.2} parent=1 // pred_check
      _
    $region15: #{timestep_embedder_apply.2} parent=1 // pred_check_branch
      %27 = sbr.rel (0) target = $region17
    $region16: #{timestep_embedder_apply.2} parent=1 // pred_region
      _
    $region17: #{timestep_embedder_apply.2} parent=1 // pred_fallthru
      _
    // Predicated region
    $region18: #{timestep_embedder_apply.2} parent=1 // pred_check
      _
    $region19: #{timestep_embedder_apply.2} parent=1 // pred_check_branch
      %29 = sbr.rel (0) target = $region21
    $region20: #{timestep_embedder_apply.2} parent=1 // pred_region
      %30 = dma.done [#allocation3], 4096
    $region21: #{timestep_embedder_apply.2} parent=1 // pred_fallthru
      _
    %v31 = vld [vmem:[%s0] sm:$0xff]
    %v32 = vld [vmem:[%s1] sm:$0x1]
    %34 = vset.pattern.permute.xlu0 0
    %35 = vperm.xlu0 %34, %v31
    %v36 = vpop.permute.xlu0 %35
    %v39 = vlaneseq
    %v40 = vshrl.u32 %v39, 7
    %v41 = vsub.s32 0, %v40
    %v42 = vrot.slane %v32, %v41
    %v44 = vmul.f32 %v36, %v42
    %v45 = vand.u32 2147483647, %v44
    %vm46 = vcmp.le.f32.partialorder %v45, 0.7853982
    %vm47 = vcmp.lt.s32.totalorder %v44, 0
    %v48 = vand.u32 %v44, 2139095040
    %v49 = vshrl.u32 %v48, 23
    %v50 = vsub.s32 %v49, 127
    %v51 = vand.u32 2147483647, %v44
    %v52 = vand.u32 %v51, 8388607
    %v53 = vor.u32 %v52, 8388608
    %v54 = vsub.s32 0, %v53
    %v55 = vadd.s32 %v50, 1
    %vm56 = vcmp.gt.s32.totalorder %v55, 0
    %v57 = vsel %vm56, %v55, 0
    %v58 = vshrl.u32 %v57, 5
    %v59 = vand.u32 %v57, 31
    %v60 = vsub.s32 32, %v59
    %v61 = vshrl.u32 683565275, %v60
    %v62 = vshll.u32 683565275, %v59
    %v63 = vshrl.u32 2475754826, %v60
    %v64 = vor.u32 %v62, %v63
    %v65 = vshll.u32 2475754826, %v59
    %v66 = vshrl.u32 2131351028, %v60
    %v67 = vor.u32 %v65, %v66
    %v68 = vshll.u32 2131351028, %v59
    %v69 = vshrl.u32 2102212464, %v60
    %v70 = vor.u32 %v68, %v69
    %v71 = vshll.u32 2102212464, %v59
    %v72 = vshrl.u32 920167782, %v60
    %v73 = vor.u32 %v71, %v72
    %v74 = vshll.u32 920167782, %v59
    %v75 = vshrl.u32 1326507024, %v60
    %v76 = vor.u32 %v74, %v75
    %vm77 = vcmp.lt.s32.totalorder %v58, 1
    %vm78 = vcmp.lt.s32.totalorder %v58, 2
    %vm79 = vcmp.lt.s32.totalorder %v58, 3
    %vm80 = vcmp.lt.s32.totalorder %v58, 4
    %v81 = vsel %vm77, %v61, %v64
    %v82 = vsel %vm80, %v70, 2102212464
    %v83 = vsel %vm79, %v67, %v82
    %v84 = vsel %vm78, %v81, %v83
    %v85 = vsel %vm77, %v64, %v67
    %v86 = vsel %vm80, %v73, 920167782
    %v87 = vsel %vm79, %v70, %v86
    %v88 = vsel %vm78, %v85, %v87
    %v89 = vsel %vm77, %v67, %v70
    %v90 = vsel %vm80, %v76, 1326507024
    %v91 = vsel %vm79, %v73, %v90
    %v92 = vsel %vm78, %v89, %v91
    %v93 = vshll.u32 %v53, 8
    %v94 = vmul.u32.u64.compose %v93, %v92
    %v95 = vextract.low.u32 %v94
    %v96 = vextract.high.u32 %v94
    %v97 = vmul.u32.u64.compose %v93, %v88
    %v98 = vextract.low.u32 %v97
    %v99 = vextract.high.u32 %v97
    %v100 = vmul.u32 %v93, %v84
    %v101 = vadd.s32 %v96, %v98
    %vm102 = vc.u32 %v96, %v98
    %v103 = vadd.s32 %v99, 1
    %v104 = vsel %vm102, %v103, %v99
    %v105 = vadd.s32 %v100, %v104
    %v106 = vadd.s32 %v105, 536870912
    %v107 = vshrl.u32 %v106, 30
    %v108 = vshll.u32 %v107, 30
    %v109 = vsub.s32 %v105, %v108
    %vm110 = vcmp.lt.s32.totalorder %v109, 0
    %v111 = vsub.s32 0, %v109
    %v112 = vsel %vm110, %v111, %v109
    %v113 = vclz %v112
    %v114 = vsub.s32 %v113, 2
    %vm115 = vcmp.gt.s32.totalorder 0, %v114
    %v116 = vsel %vm115, 0, %v114
    %v117 = vsub.s32 32, %v116
    %v118 = vshll.u32 %v109, %v116
    %v119 = vshrl.u32 %v101, %v117
    %v120 = vor.u32 %v118, %v119
    %v121 = vsub.s32 4294967266, %v116
    %v122 = vadd.s32 %v121, 127
    %v123 = vshll.u32 %v122, 23
    %v124 = vor.u32 4788187, %v123
    %v125 = vand.u32 2147483647, %v124
    %v127 = vcvt.s32.f32 %v120
    %v128 = vmul.f32 %v127, %v125
    %v129 = vxor.u32 %v128, 2147483648
    %v130 = vsel %vm47, %v129, %v128
    %v131 = vsub.s32 4, %v107
    %v132 = vsel %vm47, %v131, %v107
    %v133 = vsel %vm46, %v44, %v130
    %v134 = vsel %vm46, 0, %v132
    %v135 = vcosq.f32.pop %v133
    %v136 = vsinq.f32.pop %v133
    %vm137 = vweird.f32 %v44
    %v138 = vand.u32 %v134, 3
    %vm139 = vcmp.lt.s32.totalorder %v138, 2
    %vm140 = vcmp.eq.s32.totalorder %v138, 0
    %v141 = vxor.u32 %v136, 2147483648
    %v142 = vsel %vm140, %v135, %v141
    %vm143 = vcmp.eq.s32.totalorder %v138, 2
    %v144 = vxor.u32 %v135, 2147483648
    %v145 = vsel %vm143, %v144, %v136
    %v146 = vsel %vm139, %v142, %v145
    %v147 = vsel %vm137, nan, %v146
    %v148 = vand.u32 2147483647, %v44
    %vm149 = vcmp.le.f32.partialorder %v148, 0.7853982
    %vm150 = vcmp.lt.s32.totalorder %v44, 0
    %v151 = vand.u32 %v44, 2139095040
    %v152 = vshrl.u32 %v151, 23
    %v153 = vsub.s32 %v152, 127
    %v154 = vand.u32 2147483647, %v44
    %v155 = vand.u32 %v154, 8388607
    %v156 = vor.u32 %v155, 8388608
    %v157 = vsub.s32 0, %v156
    %v158 = vadd.s32 %v153, 1
    %vm159 = vcmp.gt.s32.totalorder %v158, 0
    %v160 = vsel %vm159, %v158, 0
    %v161 = vshrl.u32 %v160, 5
    %v162 = vand.u32 %v160, 31
    %v163 = vsub.s32 32, %v162
    %v164 = vshrl.u32 683565275, %v163
    %v165 = vshll.u32 683565275, %v162
    %v166 = vshrl.u32 2475754826, %v163
    %v167 = vor.u32 %v165, %v166
    %v168 = vshll.u32 2475754826, %v162
    %v169 = vshrl.u32 2131351028, %v163
    %v170 = vor.u32 %v168, %v169
    %v171 = vshll.u32 2131351028, %v162
    %v172 = vshrl.u32 2102212464, %v163
    %v173 = vor.u32 %v171, %v172
    %v174 = vshll.u32 2102212464, %v162
    %v175 = vshrl.u32 920167782, %v163
    %v176 = vor.u32 %v174, %v175
    %v177 = vshll.u32 920167782, %v162
    %v178 = vshrl.u32 1326507024, %v163
    %v179 = vor.u32 %v177, %v178
    %vm180 = vcmp.lt.s32.totalorder %v161, 1
    %vm181 = vcmp.lt.s32.totalorder %v161, 2
    %vm182 = vcmp.lt.s32.totalorder %v161, 3
    %vm183 = vcmp.lt.s32.totalorder %v161, 4
    %v184 = vsel %vm180, %v164, %v167
    %v185 = vsel %vm183, %v173, 2102212464
    %v186 = vsel %vm182, %v170, %v185
    %v187 = vsel %vm181, %v184, %v186
    %v188 = vsel %vm180, %v167, %v170
    %v189 = vsel %vm183, %v176, 920167782
    %v190 = vsel %vm182, %v173, %v189
    %v191 = vsel %vm181, %v188, %v190
    %v192 = vsel %vm180, %v170, %v173
    %v193 = vsel %vm183, %v179, 1326507024
    %v194 = vsel %vm182, %v176, %v193
    %v195 = vsel %vm181, %v192, %v194
    %v196 = vshll.u32 %v156, 8
    %v197 = vmul.u32.u64.compose %v196, %v195
    %v198 = vextract.low.u32 %v197
    %v199 = vextract.high.u32 %v197
    %v200 = vmul.u32.u64.compose %v196, %v191
    %v201 = vextract.low.u32 %v200
    %v202 = vextract.high.u32 %v200
    %v203 = vmul.u32 %v196, %v187
    %v204 = vadd.s32 %v199, %v201
    %vm205 = vc.u32 %v199, %v201
    %v206 = vadd.s32 %v202, 1
    %v207 = vsel %vm205, %v206, %v202
    %v208 = vadd.s32 %v203, %v207
    %v209 = vadd.s32 %v208, 536870912
    %v210 = vshrl.u32 %v209, 30
    %v211 = vshll.u32 %v210, 30
    %v212 = vsub.s32 %v208, %v211
    %vm213 = vcmp.lt.s32.totalorder %v212, 0
    %v214 = vsub.s32 0, %v212
    %v215 = vsel %vm213, %v214, %v212
    %v216 = vclz %v215
    %v217 = vsub.s32 %v216, 2
    %vm218 = vcmp.gt.s32.totalorder 0, %v217
    %v219 = vsel %vm218, 0, %v217
    %v220 = vsub.s32 32, %v219
    %v221 = vshll.u32 %v212, %v219
    %v222 = vshrl.u32 %v204, %v220
    %v223 = vor.u32 %v221, %v222
    %v224 = vsub.s32 4294967266, %v219
    %v225 = vadd.s32 %v224, 127
    %v226 = vshll.u32 %v225, 23
    %v227 = vor.u32 4788187, %v226
    %v228 = vand.u32 2147483647, %v227
    %v230 = vcvt.s32.f32 %v223
    %v231 = vmul.f32 %v230, %v228
    %v232 = vxor.u32 %v231, 2147483648
    %v233 = vsel %vm150, %v232, %v231
    %v234 = vsub.s32 4, %v210
    %v235 = vsel %vm150, %v234, %v210
    %v236 = vsel %vm149, %v44, %v233
    %v237 = vsel %vm149, 0, %v235
    %v238 = vcosq.f32.pop %v236
    %v239 = vsinq.f32.pop %v236
    %vm240 = vweird.f32 %v44
    %v241 = vadd.s32 %v237, 3
    %v242 = vand.u32 %v241, 3
    %vm243 = vcmp.lt.s32.totalorder %v242, 2
    %vm244 = vcmp.eq.s32.totalorder %v242, 0
    %v245 = vxor.u32 %v239, 2147483648
    %v246 = vsel %vm244, %v238, %v245
    %vm247 = vcmp.eq.s32.totalorder %v242, 2
    %v248 = vxor.u32 %v238, 2147483648
    %v249 = vsel %vm247, %v248, %v239
    %v250 = vsel %vm243, %v246, %v249
    %v251 = vsel %vm240, nan, %v250
    %v252 = vld [vmem:[#allocation2] sm:$0xff]
    %v253 = vld [vmem:[#allocation2 + $0x8] sm:$0xff]
    %v254 = vld [vmem:[#allocation2 + $0x10] sm:$0xff]
    %v255 = vld [vmem:[#allocation2 + $0x18] sm:$0xff]
    %v256 = vld [vmem:[#allocation2 + $0x20] sm:$0xff]
    %v257 = vld [vmem:[#allocation2 + $0x28] sm:$0xff]
    %v258 = vld [vmem:[#allocation2 + $0x30] sm:$0xff]
    %v259 = vld [vmem:[#allocation2 + $0x38] sm:$0xff]
    %v260 = vld [vmem:[#allocation2 + $0x40] sm:$0xff]
    %v261 = vld [vmem:[#allocation2 + $0x48] sm:$0xff]
    %v262 = vld [vmem:[#allocation2 + $0x50] sm:$0xff]
    %v263 = vld [vmem:[#allocation2 + $0x58] sm:$0xff]
    %v264 = vld [vmem:[#allocation2 + $0x60] sm:$0xff]
    %v265 = vld [vmem:[#allocation2 + $0x68] sm:$0xff]
    %v266 = vld [vmem:[#allocation2 + $0x70] sm:$0xff]
    %v267 = vld [vmem:[#allocation2 + $0x78] sm:$0xff]
    %v268 = vld [vmem:[#allocation2 + $0x80] sm:$0xff]
    %v269 = vld [vmem:[#allocation2 + $0x88] sm:$0xff]
    %v270 = vld [vmem:[#allocation2 + $0x90] sm:$0xff]
    %v271 = vld [vmem:[#allocation2 + $0x98] sm:$0xff]
    %v272 = vld [vmem:[#allocation2 + $0xa0] sm:$0xff]
    %v273 = vld [vmem:[#allocation2 + $0xa8] sm:$0xff]
    %v274 = vld [vmem:[#allocation2 + $0xb0] sm:$0xff]
    %v275 = vld [vmem:[#allocation2 + $0xb8] sm:$0xff]
    %v276 = vld [vmem:[#allocation2 + $0xc0] sm:$0xff]
    %v277 = vld [vmem:[#allocation2 + $0xc8] sm:$0xff]
    %v278 = vld [vmem:[#allocation2 + $0xd0] sm:$0xff]
    %v279 = vld [vmem:[#allocation2 + $0xd8] sm:$0xff]
    %v280 = vld [vmem:[#allocation2 + $0xe0] sm:$0xff]
    %v281 = vld [vmem:[#allocation2 + $0xe8] sm:$0xff]
    %v282 = vld [vmem:[#allocation2 + $0xf0] sm:$0xff]
    %v283 = vld [vmem:[#allocation2 + $0xf8] sm:$0xff]
    %v284 = vld [vmem:[%s3] sm:$0x1]
    %v286 = vlaneseq
    %v287 = vshrl.u32 %v286, 7
    %v288 = vsub.s32 0, %v287
    %v289 = vrot.slane %v284, %v288
    %291 = vmatprep.subr.mxu0 0.0
    %292 = vmatpush1.msra.mxu0 %v252
    %293 = vmatprep.subr.mxu0 0.0
    %294 = vmatpush1.msra.mxu0 %v253
    %295 = vmatprep.subr.mxu0 0.0
    %296 = vmatpush1.msra.mxu0 %v254
    %297 = vmatprep.subr.mxu0 0.0
    %298 = vmatpush1.msra.mxu0 %v255
    %299 = vmatprep.subr.mxu0 0.0
    %300 = vmatpush1.msra.mxu0 %v256
    %301 = vmatprep.subr.mxu0 0.0
    %302 = vmatpush1.msra.mxu0 %v257
    %303 = vmatprep.subr.mxu0 0.0
    %304 = vmatpush1.msra.mxu0 %v258
    %305 = vmatprep.subr.mxu0 0.0
    %306 = vmatpush1.msra.mxu0 %v259
    %307 = vmatprep.subr.mxu0 0.0
    %308 = vmatpush1.msra.mxu0 %v260
    %309 = vmatprep.subr.mxu0 0.0
    %310 = vmatpush1.msra.mxu0 %v261
    %311 = vmatprep.subr.mxu0 0.0
    %312 = vmatpush1.msra.mxu0 %v262
    %313 = vmatprep.subr.mxu0 0.0
    %314 = vmatpush1.msra.mxu0 %v263
    %315 = vmatprep.subr.mxu0 0.0
    %316 = vmatpush1.msra.mxu0 %v264
    %317 = vmatprep.subr.mxu0 0.0
    %318 = vmatpush1.msra.mxu0 %v265
    %319 = vmatprep.subr.mxu0 0.0
    %320 = vmatpush1.msra.mxu0 %v266
    %321 = vmatprep.subr.mxu0 0.0
    %322 = vmatpush1.msra.mxu0 %v267
    %323 = vmatprep.subr.mxu0 0.0
    %324 = vmatpush1.msra.mxu0 %v268
    %325 = vmatprep.subr.mxu0 0.0
    %326 = vmatpush1.msra.mxu0 %v269
    %327 = vmatprep.subr.mxu0 0.0
    %328 = vmatpush1.msra.mxu0 %v270
    %329 = vmatprep.subr.mxu0 0.0
    %330 = vmatpush1.msra.mxu0 %v271
    %331 = vmatprep.subr.mxu0 0.0
    %332 = vmatpush1.msra.mxu0 %v272
    %333 = vmatprep.subr.mxu0 0.0
    %334 = vmatpush1.msra.mxu0 %v273
    %335 = vmatprep.subr.mxu0 0.0
    %336 = vmatpush1.msra.mxu0 %v274
    %337 = vmatprep.subr.mxu0 0.0
    %338 = vmatpush1.msra.mxu0 %v275
    %339 = vmatprep.subr.mxu0 0.0
    %340 = vmatpush1.msra.mxu0 %v276
    %341 = vmatprep.subr.mxu0 0.0
    %342 = vmatpush1.msra.mxu0 %v277
    %343 = vmatprep.subr.mxu0 0.0
    %344 = vmatpush1.msra.mxu0 %v278
    %345 = vmatprep.subr.mxu0 0.0
    %346 = vmatpush1.msra.mxu0 %v279
    %347 = vmatprep.subr.mxu0 0.0
    %348 = vmatpush1.msra.mxu0 %v280
    %349 = vmatprep.subr.mxu0 0.0
    %350 = vmatpush1.msra.mxu0 %v281
    %351 = vmatprep.subr.mxu0 0.0
    %352 = vmatpush1.msra.mxu0 %v282
    %353 = vmatprep.subr.mxu0 0.0
    %354 = vmatpush1.msra.mxu0 %v283
    %355 = vmatprep.mubr.f32.mxu0 %v251
    %356 = vmatmul.mubr.f32.gmra.mrb[0].mxu0 %v147
    %v357 = vpop.f32.mrb[0].mxu0
    %v358 = vadd.f32 %v289, %v357
    %v359 = vpop.f32.mrb[0].mxu0
    %360 = vdwg.mxu0
    %v361 = vxor.u32 %v358, 2147483648
    %v362 = vmul.f32 %v361, 1.442695
    %v363 = vpow.pop %v362
    %v364 = vadd.f32 %v363, 1.0
    %v365 = vrcp.pop %v364
    %v366 = vmul.f32 1.0, %v365
    %v367 = vmul.f32 %v358, %v366
    %v368 = vpack.c.bf16 %v367, %v367
    %369 = vst [vmem:[%s4] sm:$0xf] %v368
    // Predicated region
    $region22: #{timestep_embedder_apply.2} parent=1 // pred_check
      _
    $region23: #{timestep_embedder_apply.2} parent=1 // pred_check_branch
      %371 = sbr.rel (0) target = $region25
    $region24: #{timestep_embedder_apply.2} parent=1 // pred_region
      _
    $region25: #{timestep_embedder_apply.2} parent=1 // pred_fallthru
      _
    // Predicated region
    $region26: #{timestep_embedder_apply.2} parent=1 // pred_check
      _
    $region27: #{timestep_embedder_apply.2} parent=1 // pred_check_branch
      %373 = sbr.rel (0) target = $region29
    $region28: #{timestep_embedder_apply.2} parent=1 // pred_region
      _
    $region29: #{timestep_embedder_apply.2} parent=1 // pred_fallthru
      _
    %374 = vsyncpa [#allocation3], 1

</llo_original>
